<compile_context>
chip_gen: v7x
topology: tpu7x:2x2x1
jax: 0.10.0
libtpu: 0.0.40
codegen_flags: <defaults>
</compile_context>

<pallas_src>
import jax
import jax.numpy as jnp
from jax.experimental import pallas as pl
from jax.experimental.pallas import tpu as pltpu


def _lstm_model_kernel(x_ref, wih_ref, whh_ref, wfc_ref, bfc_ref, out_ref, xproj_ref):
    """Fused dual-LSTM recurrence + merged FC heads.

    x_ref:     (T*Bp, Dpad)  time-major rows (t*Bp + b), bias ones-column folded in
    wih_ref:   (Dpad, 8H)    combined input-proj weights (+ bias row), fused gate
                             order [o, g, f, i]; each gate block = [lstm1 | lstm2];
                             g columns pre-scaled by 2
    whh_ref:   (2H, 8H)      per-gate block-diagonal recurrent weights, bf16,
                             same gate layout / g-scaling
    wfc_ref:   (2H, 8)       merged FC heads [fc_7d | fc_1d]
    bfc_ref:   (1, 8)        merged FC biases
    out_ref:   (Bp, 8)       [output_7d | output_1d]
    xproj_ref: (T*Bp, 8H)    VMEM scratch for the hoisted input projection
    """
    Bp = out_ref.shape[0]
    T = x_ref.shape[0] // Bp
    G2 = whh_ref.shape[0]          # 2H : fused hidden width
    G8 = whh_ref.shape[1]          # 8H : fused gate width
    f32 = jnp.float32

    # Hoisted input projection for BOTH LSTMs (+ folded bias): one big MXU
    # matmul, off the serial chain -> keep f32 for accuracy.
    xproj_ref[...] = jnp.dot(x_ref[...], wih_ref[...], preferred_element_type=f32)

    # Hoisted per-lane activation fixup: g columns (fused block 1, lanes
    # [G2, 2*G2)) were pre-scaled by 2, so tanh(g) = 2*sigmoid(2g) - 1 comes out
    # of the single sigmoid pass via scale/offset.
    lane = jax.lax.broadcasted_iota(jnp.int32, (Bp, G8), 1)
    is_g = jnp.logical_and(lane >= G2, lane < 2 * G2)
    scale = jnp.where(is_g, 2.0, 1.0).astype(f32)
    offset = jnp.where(is_g, -1.0, 0.0).astype(f32)

    # Mask selecting the low 64-lane half of a 128-lane pair.
    lane2 = jax.lax.broadcasted_iota(jnp.int32, (Bp, 2 * G2), 1)
    low_half = lane2 < G2

    whh = whh_ref[...]                                  # (2H, 8H) bf16, resident
    cc = jnp.zeros((Bp, 2 * G2), f32)                   # [c | c] duplicated cell state
    h = jnp.zeros((Bp, G2), f32)

    for t in range(T):                                  # T is small: static unroll
        gates = xproj_ref[pl.ds(t * Bp, Bp), :]         # (Bp, 8H)
        if t > 0:                                       # h == 0 at t == 0
            gates = gates + jnp.dot(h.astype(jnp.bfloat16), whh,
                                    preferred_element_type=f32)
        acts = jax.nn.sigmoid(gates) * scale + offset   # one EUP pass over 8H lanes
        s_lo = acts[:, :2 * G2]                         # [ sig(o) | tanh(g) ]
        s_hi = acts[:, 2 * G2:]                         # [ sig(f) | sig(i)  ]
        mix = jnp.where(low_half, cc, s_lo)             # [ c      | tanh(g) ]  (select, no lane move)
        prod = s_hi * mix                               # [ f*c    | i*g     ]
        cc = prod + pltpu.roll(prod, shift=G2, axis=1)  # [ c_new  | c_new   ]  (one roll/step)
        h = s_lo[:, :G2] * jnp.tanh(cc[:, :G2])         # o * tanh(c_new), offset-0 slices

    # TODO(synk): nn.Dropout is stochastic in train mode; modeled as identity (eval).
    out_ref[...] = (jnp.dot(h, wfc_ref[...], preferred_element_type=f32)
                    + bfc_ref[...])


def pack_params(params):
    """One-time packing of PyTorch-layout params into fused kernel weights."""
    (w_ih1, w_hh1, b_ih1, b_hh1,
     w_ih2, w_hh2, b_ih2, b_hh2,
     w1d, bias1d, w7d, bias7d) = params
    f32 = jnp.float32
    H = w_hh1.shape[1]
    D1 = w_ih1.shape[1]
    D2 = w_ih2.shape[1]
    order = (3, 2, 1, 0)                 # PyTorch [i,f,g,o] -> fused [o,g,f,i]

    wih1_t, whh1_t = w_ih1.T.astype(f32), w_hh1.T.astype(f32)    # (D1,4H), (H,4H)
    wih2_t, whh2_t = w_ih2.T.astype(f32), w_hh2.T.astype(f32)
    b1 = (b_ih1 + b_hh1).astype(f32)
    b2 = (b_ih2 + b_hh2).astype(f32)

    def col(w_t, g):
        return w_t[:, g * H:(g + 1) * H]

    z_d1 = jnp.zeros((D1, H), f32)
    z_d2 = jnp.zeros((D2, H), f32)
    z_h = jnp.zeros((H, H), f32)

    # Combined input-projection weight: rows 0:D1 feed lstm1 lanes, rows D1:D1+D2
    # feed lstm2 lanes, last row = combined (b_ih + b_hh) biases (ones-column trick).
    wih_top = jnp.concatenate(
        [jnp.concatenate([col(wih1_t, g), z_d1], axis=1) for g in order], axis=1)
    wih_bot = jnp.concatenate(
        [jnp.concatenate([z_d2, col(wih2_t, g)], axis=1) for g in order], axis=1)
    b_row = jnp.concatenate(
        [jnp.concatenate([b1[g * H:(g + 1) * H], b2[g * H:(g + 1) * H]])
         for g in order]).reshape(1, 8 * H)
    wih_aug = jnp.concatenate([wih_top, wih_bot, b_row], axis=0)     # (D1+D2+1, 8H)

    # Per-gate block-diagonal recurrent weights.
    whh_top = jnp.concatenate(
        [jnp.concatenate([col(whh1_t, g), z_h], axis=1) for g in order], axis=1)
    whh_bot = jnp.concatenate(
        [jnp.concatenate([z_h, col(whh2_t, g)], axis=1) for g in order], axis=1)
    whh_comb = jnp.concatenate([whh_top, whh_bot], axis=0)           # (2H, 8H)

    # Fold the 2x of tanh(x) = 2*sigmoid(2x) - 1 into the g-gate columns
    # (fused columns [2H, 4H)).
    col_idx = jnp.arange(8 * H)
    col_scale = jnp.where((col_idx >= 2 * H) & (col_idx < 4 * H), 2.0, 1.0).astype(f32)
    wih_aug = wih_aug * col_scale[None, :]
    whh_comb = (whh_comb * col_scale[None, :]).astype(jnp.bfloat16)  # single-pass MXU

    # Pad the augmented input-projection rows (= x lane width) to a multiple of 8.
    din = D1 + D2 + 1
    din_pad = ((din + 7) // 8) * 8
    wih_aug = jnp.pad(wih_aug, ((0, din_pad - din), (0, 0)))

    # Merged FC heads: columns [0:7] = fc_7d, column [7] = fc_1d.
    wfc = jnp.concatenate([w7d.T, w1d.T], axis=1).astype(f32)        # (2H, 8)
    bfc = jnp.concatenate([bias7d, bias1d]).reshape(1, 8).astype(f32)
    return (wih_aug, whh_comb, wfc, bfc)


@jax.jit
def lstm_model_forward(input1, input2, packed):
    """Jitted wrapper. Returns (output_7d, output_1d), matching the PyTorch module."""
    wih_aug, whh_bf, wfc, bfc = packed
    f32 = jnp.float32
    B, T, D1 = input1.shape
    D2 = input2.shape[2]
    H = whh_bf.shape[0] // 2
    Bp = ((B + 7) // 8) * 8
    din_pad = wih_aug.shape[0]

    # Concat features, pad batch to 8 sublanes, time-major rows, append the
    # bias ones-column, pad lanes to match the packed projection rows.
    x = jnp.concatenate([input1, input2], axis=-1).astype(f32)       # (B, T, D1+D2)
    x = jnp.pad(x, ((0, Bp - B), (0, 0), (0, 0)))                    # (Bp, T, D1+D2)
    x = jnp.transpose(x, (1, 0, 2)).reshape(T * Bp, D1 + D2)         # (T*Bp, D1+D2)
    x = jnp.concatenate([x, jnp.ones((T * Bp, 1), f32)], axis=1)     # bias column
    x = jnp.pad(x, ((0, 0), (0, din_pad - (D1 + D2 + 1))))           # (T*Bp, Dpad)

    vmem = pl.BlockSpec(memory_space=pltpu.MemorySpace.VMEM)
    out = pl.pallas_call(
        _lstm_model_kernel,
        out_shape=jax.ShapeDtypeStruct((Bp, 8), f32),
        in_specs=[vmem] * 5,
        out_specs=vmem,
        scratch_shapes=[pltpu.VMEM((T * Bp, 8 * H), f32)],
    )(x, wih_aug, whh_bf, wfc, bfc)

    out7 = out[:B, 0:7]
    out1 = out[:B, 7:8]
    return out7, out1


def reference_forward(input1, input2, params):
    """Pure-JAX reference reproducing the PyTorch forward (dropout = identity)."""
    (w_ih1, w_hh1, b_ih1, b_hh1,
     w_ih2, w_hh2, b_ih2, b_hh2,
     w1d, bias1d, w7d, bias7d) = params
    H = w_hh1.shape[1]

    def run_lstm(x, w_ih, w_hh, b_ih, b_hh):
        B, T, _ = x.shape
        h = jnp.zeros((B, H), jnp.float32)
        c = jnp.zeros((B, H), jnp.float32)
        for t in range(T):
            gates = x[:, t, :] @ w_ih.T + b_ih + h @ w_hh.T + b_hh
            i = jax.nn.sigmoid(gates[:, 0 * H:1 * H])
            f = jax.nn.sigmoid(gates[:, 1 * H:2 * H])
            g = jnp.tanh(gates[:, 2 * H:3 * H])
            o = jax.nn.sigmoid(gates[:, 3 * H:4 * H])
            c = f * c + i * g
            h = o * jnp.tanh(c)
        return h

    h1 = run_lstm(input1, w_ih1, w_hh1, b_ih1, b_hh1)
    h2 = run_lstm(input2, w_ih2, w_hh2, b_ih2, b_hh2)
    comb = jnp.concatenate([h1, h2], axis=1)
    out1 = comb @ w1d.T + bias1d
    out7 = comb @ w7d.T + bias7d
    return out7, out1


def init_params(key, input_dim1, input_dim2, hidden_dim):
    """Deterministic synthetic init matching PyTorch parameter shapes."""
    ks = jax.random.split(key, 12)
    u = lambda k, shape: jax.random.uniform(
        k, shape, jnp.float32, minval=-1.0, maxval=1.0) / jnp.sqrt(hidden_dim)
    H = hidden_dim
    return (
        u(ks[0], (4 * H, input_dim1)),   # lstm1 weight_ih_l0
        u(ks[1], (4 * H, H)),            # lstm1 weight_hh_l0
        u(ks[2], (4 * H,)),              # lstm1 bias_ih_l0
        u(ks[3], (4 * H,)),              # lstm1 bias_hh_l0
        u(ks[4], (4 * H, input_dim2)),   # lstm2 weight_ih_l0
        u(ks[5], (4 * H, H)),            # lstm2 weight_hh_l0
        u(ks[6], (4 * H,)),              # lstm2 bias_ih_l0
        u(ks[7], (4 * H,)),              # lstm2 bias_hh_l0
        u(ks[8], (1, 2 * H)),            # fc_1d weight
        u(ks[9], (1,)),                  # fc_1d bias
        u(ks[10], (7, 2 * H)),           # fc_7d weight
        u(ks[11], (7,)),                 # fc_7d bias
    )


if __name__ == "__main__":
    B, T, D1, D2, H = 4, 8, 4, 6, 32

    key = jax.random.PRNGKey(0)
    k_x1, k_x2, k_p = jax.random.split(key, 3)
    input1 = jax.random.normal(k_x1, (B, T, D1), jnp.float32)
    input2 = jax.random.normal(k_x2, (B, T, D2), jnp.float32)
    params = init_params(k_p, D1, D2, H)

    packed = pack_params(params)                 # one-time weight packing (hoisted)

    out7, out1 = lstm_model_forward(input1, input2, packed)
    jax.block_until_ready((out7, out1))

    ref7, ref1 = reference_forward(input1, input2, params)
    assert out7.shape == (B, 7) and out1.shape == (B, 1)
    # bf16 recurrent matmul + tanh-via-sigmoid rewrite -> slightly looser than 1e-5.
    assert jnp.allclose(out7, ref7, atol=2e-2, rtol=2e-2), \
        float(jnp.max(jnp.abs(out7 - ref7)))
    assert jnp.allclose(out1, ref1, atol=2e-2, rtol=2e-2), \
        float(jnp.max(jnp.abs(out1 - ref1)))

    print("KERNEL_OK")
</pallas_src>

<mosaic_0001>
module attributes {stable_mosaic.version = 11 : i64} {
  func.func @_lstm_model_kernel(%arg0: memref<64x16xf32, #tpu.memory_space<vmem>>, %arg1: memref<16x256xf32, #tpu.memory_space<vmem>>, %arg2: memref<64x256xbf16, #tpu.memory_space<vmem>>, %arg3: memref<64x8xf32, #tpu.memory_space<vmem>>, %arg4: memref<1x8xf32, #tpu.memory_space<vmem>>, %arg5: memref<8x8xf32, #tpu.memory_space<vmem>>, %arg6: memref<64x256xf32, #tpu.memory_space<vmem>>) attributes {dimension_semantics = [], scalar_prefetch = 0 : i64, scratch_operands = 1 : i64, tpu.core_type = #tpu.core_type<tc>} {
    %c0 = arith.constant 0 : index
    %c0_0 = arith.constant 0 : index
    %0 = vector.load %arg0[%c0, %c0_0] : memref<64x16xf32, #tpu.memory_space<vmem>>, vector<64x16xf32>
    %c0_1 = arith.constant 0 : index
    %c0_2 = arith.constant 0 : index
    %1 = vector.load %arg1[%c0_1, %c0_2] : memref<16x256xf32, #tpu.memory_space<vmem>>, vector<16x256xf32>
    %cst = arith.constant dense<0.000000e+00> : vector<64x256xf32>
    %2 = tpu.matmul %0, %1, %cst {dimension_numbers = #tpu.dot_dimension_numbers<[1], [0], [0], [1], [0, 0, 1, 1], [], []>} : vector<64x16xf32>, vector<16x256xf32>, vector<64x256xf32> -> vector<64x256xf32>
    %c0_3 = arith.constant 0 : index
    %c0_4 = arith.constant 0 : index
    %3 = vector.load %arg6[%c0_3, %c0_4] : memref<64x256xf32, #tpu.memory_space<vmem>>, vector<64x256xf32>
    tpu.vector_store %arg6[%c0_3, %c0_4], %2 {strides = array<i32>} : memref<64x256xf32, #tpu.memory_space<vmem>>, vector<64x256xf32>,
    %4 = tpu.iota {dimensions = array<i32: 1>} : vector<8x256xi32>
    %c64_i32 = arith.constant 64 : i32
    %5 = vector.broadcast %c64_i32 : i32 to vector<8x256xi32>
    %6 = arith.cmpi sge, %4, %5 : vector<8x256xi32>
    %c128_i32 = arith.constant 128 : i32
    %7 = vector.broadcast %c128_i32 : i32 to vector<8x256xi32>
    %8 = arith.cmpi slt, %4, %7 : vector<8x256xi32>
    %9 = arith.andi %6, %8 : vector<8x256xi1>
    %cst_5 = arith.constant 2.000000e+00 : f32
    %cst_6 = arith.constant 1.000000e+00 : f32
    %10 = vector.broadcast %cst_5 : f32 to vector<8x256xf32>
    %11 = vector.broadcast %cst_6 : f32 to vector<8x256xf32>
    %12 = arith.select %9, %10, %11 : vector<8x256xi1>, vector<8x256xf32>
    %cst_7 = arith.constant -1.000000e+00 : f32
    %cst_8 = arith.constant 0.000000e+00 : f32
    %13 = vector.broadcast %cst_7 : f32 to vector<8x256xf32>
    %14 = vector.broadcast %cst_8 : f32 to vector<8x256xf32>
    %15 = arith.select %9, %13, %14 : vector<8x256xi1>, vector<8x256xf32>
    %16 = tpu.iota {dimensions = array<i32: 1>} : vector<8x128xi32>
    %c64_i32_9 = arith.constant 64 : i32
    %17 = vector.broadcast %c64_i32_9 : i32 to vector<8x128xi32>
    %18 = arith.cmpi slt, %16, %17 : vector<8x128xi32>
    %c0_10 = arith.constant 0 : index
    %c0_11 = arith.constant 0 : index
    %19 = vector.load %arg2[%c0_10, %c0_11] : memref<64x256xbf16, #tpu.memory_space<vmem>>, vector<64x256xbf16>
    %cst_12 = arith.constant 0.000000e+00 : f32
    %20 = vector.broadcast %cst_12 : f32 to vector<8x128xf32>
    %c0_13 = arith.constant 0 : index
    %c0_14 = arith.constant 0 : index
    %21 = vector.load %arg6[%c0_13, %c0_14] : memref<64x256xf32, #tpu.memory_space<vmem>>, vector<8x256xf32>
    %22 = arith.negf %21 : vector<8x256xf32>
    %23 = math.exp %22 : vector<8x256xf32>
    %cst_15 = arith.constant 1.000000e+00 : f32
    %24 = vector.broadcast %cst_15 : f32 to vector<8x256xf32>
    %25 = arith.addf %24, %23 : vector<8x256xf32>
    %26 = arith.divf %24, %25 : vector<8x256xf32>
    %27 = arith.mulf %26, %12 : vector<8x256xf32>
    %28 = arith.addf %27, %15 : vector<8x256xf32>
    %29 = vector.extract_strided_slice %28 {offsets = [0, 0], sizes = [8, 128], strides = [1, 1]} : vector<8x256xf32> to vector<8x128xf32>
    %30 = vector.extract_strided_slice %28 {offsets = [0, 128], sizes = [8, 128], strides = [1, 1]} : vector<8x256xf32> to vector<8x128xf32>
    %31 = arith.select %18, %20, %29 : vector<8x128xi1>, vector<8x128xf32>
    %32 = arith.mulf %30, %31 : vector<8x128xf32>
    %c64_i32_16 = arith.constant 64 : i32
    %33 = tpu.dynamic_rotate %32 by %c64_i32_16 dim 1 : vector<8x128xf32>, i32 -> vector<8x128xf32>
    %34 = arith.addf %32, %33 : vector<8x128xf32>
    %35 = vector.extract_strided_slice %29 {offsets = [0, 0], sizes = [8, 64], strides = [1, 1]} : vector<8x128xf32> to vector<8x64xf32>
    %36 = vector.extract_strided_slice %34 {offsets = [0, 0], sizes = [8, 64], strides = [1, 1]} : vector<8x128xf32> to vector<8x64xf32>
    %37 = math.tanh %36 : vector<8x64xf32>
    %38 = arith.mulf %35, %37 : vector<8x64xf32>
    %c8 = arith.constant 8 : index
    %c0_17 = arith.constant 0 : index
    %39 = vector.load %arg6[%c8, %c0_17] : memref<64x256xf32, #tpu.memory_space<vmem>>, vector<8x256xf32>
    %40 = arith.truncf %38 : vector<8x64xf32> to vector<8x64xbf16>
    %cst_18 = arith.constant dense<0.000000e+00> : vector<8x256xf32>
    %41 = tpu.matmul %40, %19, %cst_18 {dimension_numbers = #tpu.dot_dimension_numbers<[1], [0], [0], [1], [0, 0, 1, 1], [], []>} : vector<8x64xbf16>, vector<64x256xbf16>, vector<8x256xf32> -> vector<8x256xf32>
    %42 = arith.addf %39, %41 : vector<8x256xf32>
    %43 = arith.negf %42 : vector<8x256xf32>
    %44 = math.exp %43 : vector<8x256xf32>
    %cst_19 = arith.constant 1.000000e+00 : f32
    %45 = vector.broadcast %cst_19 : f32 to vector<8x256xf32>
    %46 = arith.addf %45, %44 : vector<8x256xf32>
    %47 = arith.divf %45, %46 : vector<8x256xf32>
    %48 = arith.mulf %47, %12 : vector<8x256xf32>
    %49 = arith.addf %48, %15 : vector<8x256xf32>
    %50 = vector.extract_strided_slice %49 {offsets = [0, 0], sizes = [8, 128], strides = [1, 1]} : vector<8x256xf32> to vector<8x128xf32>
    %51 = vector.extract_strided_slice %49 {offsets = [0, 128], sizes = [8, 128], strides = [1, 1]} : vector<8x256xf32> to vector<8x128xf32>
    %52 = arith.select %18, %34, %50 : vector<8x128xi1>, vector<8x128xf32>
    %53 = arith.mulf %51, %52 : vector<8x128xf32>
    %c64_i32_20 = arith.constant 64 : i32
    %54 = tpu.dynamic_rotate %53 by %c64_i32_20 dim 1 : vector<8x128xf32>, i32 -> vector<8x128xf32>
    %55 = arith.addf %53, %54 : vector<8x128xf32>
    %56 = vector.extract_strided_slice %50 {offsets = [0, 0], sizes = [8, 64], strides = [1, 1]} : vector<8x128xf32> to vector<8x64xf32>
    %57 = vector.extract_strided_slice %55 {offsets = [0, 0], sizes = [8, 64], strides = [1, 1]} : vector<8x128xf32> to vector<8x64xf32>
    %58 = math.tanh %57 : vector<8x64xf32>
    %59 = arith.mulf %56, %58 : vector<8x64xf32>
    %c16 = arith.constant 16 : index
    %c0_21 = arith.constant 0 : index
    %60 = vector.load %arg6[%c16, %c0_21] : memref<64x256xf32, #tpu.memory_space<vmem>>, vector<8x256xf32>
    %61 = arith.truncf %59 : vector<8x64xf32> to vector<8x64xbf16>
    %cst_22 = arith.constant dense<0.000000e+00> : vector<8x256xf32>
    %62 = tpu.matmul %61, %19, %cst_22 {dimension_numbers = #tpu.dot_dimension_numbers<[1], [0], [0], [1], [0, 0, 1, 1], [], []>} : vector<8x64xbf16>, vector<64x256xbf16>, vector<8x256xf32> -> vector<8x256xf32>
    %63 = arith.addf %60, %62 : vector<8x256xf32>
    %64 = arith.negf %63 : vector<8x256xf32>
    %65 = math.exp %64 : vector<8x256xf32>
    %cst_23 = arith.constant 1.000000e+00 : f32
    %66 = vector.broadcast %cst_23 : f32 to vector<8x256xf32>
    %67 = arith.addf %66, %65 : vector<8x256xf32>
    %68 = arith.divf %66, %67 : vector<8x256xf32>
    %69 = arith.mulf %68, %12 : vector<8x256xf32>
    %70 = arith.addf %69, %15 : vector<8x256xf32>
    %71 = vector.extract_strided_slice %70 {offsets = [0, 0], sizes = [8, 128], strides = [1, 1]} : vector<8x256xf32> to vector<8x128xf32>
    %72 = vector.extract_strided_slice %70 {offsets = [0, 128], sizes = [8, 128], strides = [1, 1]} : vector<8x256xf32> to vector<8x128xf32>
    %73 = arith.select %18, %55, %71 : vector<8x128xi1>, vector<8x128xf32>
    %74 = arith.mulf %72, %73 : vector<8x128xf32>
    %c64_i32_24 = arith.constant 64 : i32
    %75 = tpu.dynamic_rotate %74 by %c64_i32_24 dim 1 : vector<8x128xf32>, i32 -> vector<8x128xf32>
    %76 = arith.addf %74, %75 : vector<8x128xf32>
    %77 = vector.extract_strided_slice %71 {offsets = [0, 0], sizes = [8, 64], strides = [1, 1]} : vector<8x128xf32> to vector<8x64xf32>
    %78 = vector.extract_strided_slice %76 {offsets = [0, 0], sizes = [8, 64], strides = [1, 1]} : vector<8x128xf32> to vector<8x64xf32>
    %79 = math.tanh %78 : vector<8x64xf32>
    %80 = arith.mulf %77, %79 : vector<8x64xf32>
    %c24 = arith.constant 24 : index
    %c0_25 = arith.constant 0 : index
    %81 = vector.load %arg6[%c24, %c0_25] : memref<64x256xf32, #tpu.memory_space<vmem>>, vector<8x256xf32>
    %82 = arith.truncf %80 : vector<8x64xf32> to vector<8x64xbf16>
    %cst_26 = arith.constant dense<0.000000e+00> : vector<8x256xf32>
    %83 = tpu.matmul %82, %19, %cst_26 {dimension_numbers = #tpu.dot_dimension_numbers<[1], [0], [0], [1], [0, 0, 1, 1], [], []>} : vector<8x64xbf16>, vector<64x256xbf16>, vector<8x256xf32> -> vector<8x256xf32>
    %84 = arith.addf %81, %83 : vector<8x256xf32>
    %85 = arith.negf %84 : vector<8x256xf32>
    %86 = math.exp %85 : vector<8x256xf32>
    %cst_27 = arith.constant 1.000000e+00 : f32
    %87 = vector.broadcast %cst_27 : f32 to vector<8x256xf32>
    %88 = arith.addf %87, %86 : vector<8x256xf32>
    %89 = arith.divf %87, %88 : vector<8x256xf32>
    %90 = arith.mulf %89, %12 : vector<8x256xf32>
    %91 = arith.addf %90, %15 : vector<8x256xf32>
    %92 = vector.extract_strided_slice %91 {offsets = [0, 0], sizes = [8, 128], strides = [1, 1]} : vector<8x256xf32> to vector<8x128xf32>
    %93 = vector.extract_strided_slice %91 {offsets = [0, 128], sizes = [8, 128], strides = [1, 1]} : vector<8x256xf32> to vector<8x128xf32>
    %94 = arith.select %18, %76, %92 : vector<8x128xi1>, vector<8x128xf32>
    %95 = arith.mulf %93, %94 : vector<8x128xf32>
    %c64_i32_28 = arith.constant 64 : i32
    %96 = tpu.dynamic_rotate %95 by %c64_i32_28 dim 1 : vector<8x128xf32>, i32 -> vector<8x128xf32>
    %97 = arith.addf %95, %96 : vector<8x128xf32>
    %98 = vector.extract_strided_slice %92 {offsets = [0, 0], sizes = [8, 64], strides = [1, 1]} : vector<8x128xf32> to vector<8x64xf32>
    %99 = vector.extract_strided_slice %97 {offsets = [0, 0], sizes = [8, 64], strides = [1, 1]} : vector<8x128xf32> to vector<8x64xf32>
    %100 = math.tanh %99 : vector<8x64xf32>
    %101 = arith.mulf %98, %100 : vector<8x64xf32>
    %c32 = arith.constant 32 : index
    %c0_29 = arith.constant 0 : index
    %102 = vector.load %arg6[%c32, %c0_29] : memref<64x256xf32, #tpu.memory_space<vmem>>, vector<8x256xf32>
    %103 = arith.truncf %101 : vector<8x64xf32> to vector<8x64xbf16>
    %cst_30 = arith.constant dense<0.000000e+00> : vector<8x256xf32>
    %104 = tpu.matmul %103, %19, %cst_30 {dimension_numbers = #tpu.dot_dimension_numbers<[1], [0], [0], [1], [0, 0, 1, 1], [], []>} : vector<8x64xbf16>, vector<64x256xbf16>, vector<8x256xf32> -> vector<8x256xf32>
    %105 = arith.addf %102, %104 : vector<8x256xf32>
    %106 = arith.negf %105 : vector<8x256xf32>
    %107 = math.exp %106 : vector<8x256xf32>
    %cst_31 = arith.constant 1.000000e+00 : f32
    %108 = vector.broadcast %cst_31 : f32 to vector<8x256xf32>
    %109 = arith.addf %108, %107 : vector<8x256xf32>
    %110 = arith.divf %108, %109 : vector<8x256xf32>
    %111 = arith.mulf %110, %12 : vector<8x256xf32>
    %112 = arith.addf %111, %15 : vector<8x256xf32>
    %113 = vector.extract_strided_slice %112 {offsets = [0, 0], sizes = [8, 128], strides = [1, 1]} : vector<8x256xf32> to vector<8x128xf32>
    %114 = vector.extract_strided_slice %112 {offsets = [0, 128], sizes = [8, 128], strides = [1, 1]} : vector<8x256xf32> to vector<8x128xf32>
    %115 = arith.select %18, %97, %113 : vector<8x128xi1>, vector<8x128xf32>
    %116 = arith.mulf %114, %115 : vector<8x128xf32>
    %c64_i32_32 = arith.constant 64 : i32
    %117 = tpu.dynamic_rotate %116 by %c64_i32_32 dim 1 : vector<8x128xf32>, i32 -> vector<8x128xf32>
    %118 = arith.addf %116, %117 : vector<8x128xf32>
    %119 = vector.extract_strided_slice %113 {offsets = [0, 0], sizes = [8, 64], strides = [1, 1]} : vector<8x128xf32> to vector<8x64xf32>
    %120 = vector.extract_strided_slice %118 {offsets = [0, 0], sizes = [8, 64], strides = [1, 1]} : vector<8x128xf32> to vector<8x64xf32>
    %121 = math.tanh %120 : vector<8x64xf32>
    %122 = arith.mulf %119, %121 : vector<8x64xf32>
    %c40 = arith.constant 40 : index
    %c0_33 = arith.constant 0 : index
    %123 = vector.load %arg6[%c40, %c0_33] : memref<64x256xf32, #tpu.memory_space<vmem>>, vector<8x256xf32>
    %124 = arith.truncf %122 : vector<8x64xf32> to vector<8x64xbf16>
    %cst_34 = arith.constant dense<0.000000e+00> : vector<8x256xf32>
    %125 = tpu.matmul %124, %19, %cst_34 {dimension_numbers = #tpu.dot_dimension_numbers<[1], [0], [0], [1], [0, 0, 1, 1], [], []>} : vector<8x64xbf16>, vector<64x256xbf16>, vector<8x256xf32> -> vector<8x256xf32>
    %126 = arith.addf %123, %125 : vector<8x256xf32>
    %127 = arith.negf %126 : vector<8x256xf32>
    %128 = math.exp %127 : vector<8x256xf32>
    %cst_35 = arith.constant 1.000000e+00 : f32
    %129 = vector.broadcast %cst_35 : f32 to vector<8x256xf32>
    %130 = arith.addf %129, %128 : vector<8x256xf32>
    %131 = arith.divf %129, %130 : vector<8x256xf32>
    %132 = arith.mulf %131, %12 : vector<8x256xf32>
    %133 = arith.addf %132, %15 : vector<8x256xf32>
    %134 = vector.extract_strided_slice %133 {offsets = [0, 0], sizes = [8, 128], strides = [1, 1]} : vector<8x256xf32> to vector<8x128xf32>
    %135 = vector.extract_strided_slice %133 {offsets = [0, 128], sizes = [8, 128], strides = [1, 1]} : vector<8x256xf32> to vector<8x128xf32>
    %136 = arith.select %18, %118, %134 : vector<8x128xi1>, vector<8x128xf32>
    %137 = arith.mulf %135, %136 : vector<8x128xf32>
    %c64_i32_36 = arith.constant 64 : i32
    %138 = tpu.dynamic_rotate %137 by %c64_i32_36 dim 1 : vector<8x128xf32>, i32 -> vector<8x128xf32>
    %139 = arith.addf %137, %138 : vector<8x128xf32>
    %140 = vector.extract_strided_slice %134 {offsets = [0, 0], sizes = [8, 64], strides = [1, 1]} : vector<8x128xf32> to vector<8x64xf32>
    %141 = vector.extract_strided_slice %139 {offsets = [0, 0], sizes = [8, 64], strides = [1, 1]} : vector<8x128xf32> to vector<8x64xf32>
    %142 = math.tanh %141 : vector<8x64xf32>
    %143 = arith.mulf %140, %142 : vector<8x64xf32>
    %c48 = arith.constant 48 : index
    %c0_37 = arith.constant 0 : index
    %144 = vector.load %arg6[%c48, %c0_37] : memref<64x256xf32, #tpu.memory_space<vmem>>, vector<8x256xf32>
    %145 = arith.truncf %143 : vector<8x64xf32> to vector<8x64xbf16>
    %cst_38 = arith.constant dense<0.000000e+00> : vector<8x256xf32>
    %146 = tpu.matmul %145, %19, %cst_38 {dimension_numbers = #tpu.dot_dimension_numbers<[1], [0], [0], [1], [0, 0, 1, 1], [], []>} : vector<8x64xbf16>, vector<64x256xbf16>, vector<8x256xf32> -> vector<8x256xf32>
    %147 = arith.addf %144, %146 : vector<8x256xf32>
    %148 = arith.negf %147 : vector<8x256xf32>
    %149 = math.exp %148 : vector<8x256xf32>
    %cst_39 = arith.constant 1.000000e+00 : f32
    %150 = vector.broadcast %cst_39 : f32 to vector<8x256xf32>
    %151 = arith.addf %150, %149 : vector<8x256xf32>
    %152 = arith.divf %150, %151 : vector<8x256xf32>
    %153 = arith.mulf %152, %12 : vector<8x256xf32>
    %154 = arith.addf %153, %15 : vector<8x256xf32>
    %155 = vector.extract_strided_slice %154 {offsets = [0, 0], sizes = [8, 128], strides = [1, 1]} : vector<8x256xf32> to vector<8x128xf32>
    %156 = vector.extract_strided_slice %154 {offsets = [0, 128], sizes = [8, 128], strides = [1, 1]} : vector<8x256xf32> to vector<8x128xf32>
    %157 = arith.select %18, %139, %155 : vector<8x128xi1>, vector<8x128xf32>
    %158 = arith.mulf %156, %157 : vector<8x128xf32>
    %c64_i32_40 = arith.constant 64 : i32
    %159 = tpu.dynamic_rotate %158 by %c64_i32_40 dim 1 : vector<8x128xf32>, i32 -> vector<8x128xf32>
    %160 = arith.addf %158, %159 : vector<8x128xf32>
    %161 = vector.extract_strided_slice %155 {offsets = [0, 0], sizes = [8, 64], strides = [1, 1]} : vector<8x128xf32> to vector<8x64xf32>
    %162 = vector.extract_strided_slice %160 {offsets = [0, 0], sizes = [8, 64], strides = [1, 1]} : vector<8x128xf32> to vector<8x64xf32>
    %163 = math.tanh %162 : vector<8x64xf32>
    %164 = arith.mulf %161, %163 : vector<8x64xf32>
    %c56 = arith.constant 56 : index
    %c0_41 = arith.constant 0 : index
    %165 = vector.load %arg6[%c56, %c0_41] : memref<64x256xf32, #tpu.memory_space<vmem>>, vector<8x256xf32>
    %166 = arith.truncf %164 : vector<8x64xf32> to vector<8x64xbf16>
    %cst_42 = arith.constant dense<0.000000e+00> : vector<8x256xf32>
    %167 = tpu.matmul %166, %19, %cst_42 {dimension_numbers = #tpu.dot_dimension_numbers<[1], [0], [0], [1], [0, 0, 1, 1], [], []>} : vector<8x64xbf16>, vector<64x256xbf16>, vector<8x256xf32> -> vector<8x256xf32>
    %168 = arith.addf %165, %167 : vector<8x256xf32>
    %169 = arith.negf %168 : vector<8x256xf32>
    %170 = math.exp %169 : vector<8x256xf32>
    %cst_43 = arith.constant 1.000000e+00 : f32
    %171 = vector.broadcast %cst_43 : f32 to vector<8x256xf32>
    %172 = arith.addf %171, %170 : vector<8x256xf32>
    %173 = arith.divf %171, %172 : vector<8x256xf32>
    %174 = arith.mulf %173, %12 : vector<8x256xf32>
    %175 = arith.addf %174, %15 : vector<8x256xf32>
    %176 = vector.extract_strided_slice %175 {offsets = [0, 0], sizes = [8, 128], strides = [1, 1]} : vector<8x256xf32> to vector<8x128xf32>
    %177 = vector.extract_strided_slice %175 {offsets = [0, 128], sizes = [8, 128], strides = [1, 1]} : vector<8x256xf32> to vector<8x128xf32>
    %178 = arith.select %18, %160, %176 : vector<8x128xi1>, vector<8x128xf32>
    %179 = arith.mulf %177, %178 : vector<8x128xf32>
    %c64_i32_44 = arith.constant 64 : i32
    %180 = tpu.dynamic_rotate %179 by %c64_i32_44 dim 1 : vector<8x128xf32>, i32 -> vector<8x128xf32>
    %181 = arith.addf %179, %180 : vector<8x128xf32>
    %182 = vector.extract_strided_slice %176 {offsets = [0, 0], sizes = [8, 64], strides = [1, 1]} : vector<8x128xf32> to vector<8x64xf32>
    %183 = vector.extract_strided_slice %181 {offsets = [0, 0], sizes = [8, 64], strides = [1, 1]} : vector<8x128xf32> to vector<8x64xf32>
    %184 = math.tanh %183 : vector<8x64xf32>
    %185 = arith.mulf %182, %184 : vector<8x64xf32>
    %c0_45 = arith.constant 0 : index
    %c0_46 = arith.constant 0 : index
    %186 = vector.load %arg3[%c0_45, %c0_46] : memref<64x8xf32, #tpu.memory_space<vmem>>, vector<64x8xf32>
    %cst_47 = arith.constant dense<0.000000e+00> : vector<8x8xf32>
    %187 = tpu.matmul %185, %186, %cst_47 {dimension_numbers = #tpu.dot_dimension_numbers<[1], [0], [0], [1], [0, 0, 1, 1], [], []>} : vector<8x64xf32>, vector<64x8xf32>, vector<8x8xf32> -> vector<8x8xf32>
    %c0_48 = arith.constant 0 : index
    %c0_49 = arith.constant 0 : index
    %188 = vector.load %arg4[%c0_48, %c0_49] : memref<1x8xf32, #tpu.memory_space<vmem>>, vector<1x8xf32>
    %189 = vector.broadcast %188 : vector<1x8xf32> to vector<8x8xf32>
    %190 = arith.addf %187, %189 : vector<8x8xf32>
    %c0_50 = arith.constant 0 : index
    %c0_51 = arith.constant 0 : index
    %191 = vector.load %arg5[%c0_50, %c0_51] : memref<8x8xf32, #tpu.memory_space<vmem>>, vector<8x8xf32>
    tpu.vector_store %arg5[%c0_50, %c0_51], %190 {strides = array<i32>} : memref<8x8xf32, #tpu.memory_space<vmem>>, vector<8x8xf32>,
    return
  }
}

</mosaic_0001>

<llo_original>
// kernel: lstm_model_forward.1
$region0: #{lstm_model_forward.1}
  #allocation0 [shape = 'u32[]', space=smem, size = 0x4, offset = 0x4, fixed_abs, tag = 'smem constant byte address 0x4 - core index']
  #allocation1 [shape = 'u32[144,128]{1,0:T(1,128)}', space=vmem, size = 0x12000, scoped, tag = 'internal scratch']
  #allocation2 [shape = 'f32[64,256]{1,0:T(8,128)}', space=vmem, size = 0x10000, scoped, tag = 'scratch operand']
  %s0 = inlined_call_operand.vmem [shape: f32[64,16], index: 0, kind: input, shape index: {}]
  %s1 = inlined_call_operand.vmem [shape: f32[16,256], index: 1, kind: input, shape index: {}]
  %s2 = inlined_call_operand.vmem [shape: bf16[64,256], index: 2, kind: input, shape index: {}]
  %s3 = inlined_call_operand.vmem [shape: f32[64,8], index: 3, kind: input, shape index: {}]
  %s4 = inlined_call_operand.vmem [shape: f32[1,8], index: 4, kind: input, shape index: {}]
  %s5 = inlined_call_operand.vmem [shape: f32[8,8], index: 5, kind: output, shape index: {}]
  %s6 = sld [smem:[#allocation0]]
  $region30: #{lstm_model_forward.1} parent=0
    _
  %s8 = ssub.s32 1, %s6
  %s9 = scalar_select 0, %s8, %s6
  // Predicated region
  $region2: #{lstm_model_forward.1} parent=0 // pred_check
    _
  $region3: #{lstm_model_forward.1} parent=0 // pred_check_branch
    %11 = sbr.rel (0) target = $region5
  $region4: #{lstm_model_forward.1} parent=0 // pred_region
    _
  $region5: #{lstm_model_forward.1} parent=0 // pred_fallthru
    _
  // Predicated region
  $region6: #{lstm_model_forward.1} parent=0 // pred_check
    _
  $region7: #{lstm_model_forward.1} parent=0 // pred_check_branch
    %13 = sbr.rel (0) target = $region9
  $region8: #{lstm_model_forward.1} parent=0 // pred_region
    _
  $region9: #{lstm_model_forward.1} parent=0 // pred_fallthru
    _
  // Predicated region
  $region10: #{lstm_model_forward.1} parent=0 // pred_check
    _
  $region11: #{lstm_model_forward.1} parent=0 // pred_check_branch
    %15 = sbr.rel (0) target = $region13
  $region12: #{lstm_model_forward.1} parent=0 // pred_region
    _
  $region13: #{lstm_model_forward.1} parent=0 // pred_fallthru
    _
  // Predicated region
  $region14: #{lstm_model_forward.1} parent=0 // pred_check
    _
  $region15: #{lstm_model_forward.1} parent=0 // pred_check_branch
    %17 = sbr.rel (0) target = $region17
  $region16: #{lstm_model_forward.1} parent=0 // pred_region
    _
  $region17: #{lstm_model_forward.1} parent=0 // pred_fallthru
    _
  // Predicated region
  $region18: #{lstm_model_forward.1} parent=0 // pred_check
    _
  $region19: #{lstm_model_forward.1} parent=0 // pred_check_branch
    %19 = sbr.rel (0) target = $region21
  $region20: #{lstm_model_forward.1} parent=0 // pred_region
    _
  $region21: #{lstm_model_forward.1} parent=0 // pred_fallthru
    _
  %v21 = vld [vmem:[%s0] sm:$0xff]
  %v22 = vld [vmem:[%s0 + $0x8] sm:$0xff]
  %v23 = vld [vmem:[%s0 + $0x10] sm:$0xff]
  %v24 = vld [vmem:[%s0 + $0x18] sm:$0xff]
  %v25 = vld [vmem:[%s0 + $0x20] sm:$0xff]
  %v26 = vld [vmem:[%s0 + $0x28] sm:$0xff]
  %v27 = vld [vmem:[%s0 + $0x30] sm:$0xff]
  %v28 = vld [vmem:[%s0 + $0x38] sm:$0xff]
  %v29 = vld [vmem:[%s1] sm:$0xff]
  %v30 = vld [vmem:[%s1 + $0x8] sm:$0xff]
  %v31 = vld [vmem:[%s1 + $0x10] sm:$0xff]
  %v32 = vld [vmem:[%s1 + $0x18] sm:$0xff]
  %vm33 = vcmask 130048
  %v35 = vsel %vm33, %v21, 0
  %v38 = vsel %vm33, %v22, 0
  %v41 = vsel %vm33, %v23, 0
  %v44 = vsel %vm33, %v24, 0
  %v47 = vsel %vm33, %v25, 0
  %v50 = vsel %vm33, %v26, 0
  %v53 = vsel %vm33, %v27, 0
  %v56 = vsel %vm33, %v28, 0
  %58 = vmatprep.subr.mxu0 %v30
  %59 = vmatpush1.msra.mxu0 %v29
  %60 = vmatprep.subr.mxu0 %v32
  %61 = vmatpush1.msra.mxu0 %v31
  %62 = vmatprep.subr.mxu0 0.0
  %63 = vmatpush1.msra.mxu0 0.0
  %64 = vmatprep.subr.mxu0 0.0
  %65 = vmatpush1.msra.mxu0 0.0
  %66 = vmatprep.subr.mxu0 0.0
  %67 = vmatpush1.msra.mxu0 0.0
  %68 = vmatprep.subr.mxu0 0.0
  %69 = vmatpush1.msra.mxu0 0.0
  %70 = vmatprep.subr.mxu0 0.0
  %71 = vmatpush1.msra.mxu0 0.0
  %72 = vmatprep.subr.mxu0 0.0
  %73 = vmatpush1.msra.mxu0 0.0
  %74 = vmatprep.subr.mxu0 0.0
  %75 = vmatpush1.msra.mxu0 0.0
  %76 = vmatprep.subr.mxu0 0.0
  %77 = vmatpush1.msra.mxu0 0.0
  %78 = vmatprep.subr.mxu0 0.0
  %79 = vmatpush1.msra.mxu0 0.0
  %80 = vmatprep.subr.mxu0 0.0
  %81 = vmatpush1.msra.mxu0 0.0
  %82 = vmatprep.subr.mxu0 0.0
  %83 = vmatpush1.msra.mxu0 0.0
  %84 = vmatprep.subr.mxu0 0.0
  %85 = vmatpush1.msra.mxu0 0.0
  %86 = vmatprep.subr.mxu0 0.0
  %87 = vmatpush1.msra.mxu0 0.0
  %88 = vmatprep.subr.mxu0 0.0
  %89 = vmatpush1.msra.mxu0 0.0
  %90 = vmatprep.subr.mxu0 0.0
  %91 = vmatpush1.msra.mxu0 0.0
  %92 = vmatprep.subr.mxu0 0.0
  %93 = vmatpush1.msra.mxu0 0.0
  %94 = vmatprep.subr.mxu0 0.0
  %95 = vmatpush1.msra.mxu0 0.0
  %96 = vmatprep.subr.mxu0 0.0
  %97 = vmatpush1.msra.mxu0 0.0
  %98 = vmatprep.subr.mxu0 0.0
  %99 = vmatpush1.msra.mxu0 0.0
  %100 = vmatprep.subr.mxu0 0.0
  %101 = vmatpush1.msra.mxu0 0.0
  %102 = vmatprep.subr.mxu0 0.0
  %103 = vmatpush1.msra.mxu0 0.0
  %104 = vmatprep.subr.mxu0 0.0
  %105 = vmatpush1.msra.mxu0 0.0
  %106 = vmatprep.subr.mxu0 0.0
  %107 = vmatpush1.msra.mxu0 0.0
  %108 = vmatprep.subr.mxu0 0.0
  %109 = vmatpush1.msra.mxu0 0.0
  %110 = vmatprep.subr.mxu0 0.0
  %111 = vmatpush1.msra.mxu0 0.0
  %112 = vmatprep.subr.mxu0 0.0
  %113 = vmatpush1.msra.mxu0 0.0
  %114 = vmatprep.subr.mxu0 0.0
  %115 = vmatpush1.msra.mxu0 0.0
  %116 = vmatprep.subr.mxu0 0.0
  %117 = vmatpush1.msra.mxu0 0.0
  %118 = vmatprep.subr.mxu0 0.0
  %119 = vmatpush1.msra.mxu0 0.0
  %120 = vmatprep.subr.mxu0 0.0
  %121 = vmatpush1.msra.mxu0 0.0
  %122 = vmatprep.mubr.f32.mxu0 0.0
  %123 = vmatmul.mubr.f32.gmra.mrb[0].mxu0 %v35
  %v124 = vpop.f32.mrb[0].mxu0
  %v125 = vadd.f32 0.0, %v124
  %v126 = vpop.f32.mrb[0].mxu0
  %v127 = vadd.f32 0.0, %v126
  %128 = vmatprep.mubr.f32.mxu0 0.0
  %129 = vmatmul.mubr.f32.gmra.mrb[0].mxu0 %v38
  %v130 = vpop.f32.mrb[0].mxu0
  %v131 = vadd.f32 0.0, %v130
  %v132 = vpop.f32.mrb[0].mxu0
  %v133 = vadd.f32 0.0, %v132
  %134 = vmatprep.mubr.f32.mxu0 0.0
  %135 = vmatmul.mubr.f32.gmra.mrb[0].mxu0 %v41
  %v136 = vpop.f32.mrb[0].mxu0
  %v137 = vadd.f32 0.0, %v136
  %v138 = vpop.f32.mrb[0].mxu0
  %v139 = vadd.f32 0.0, %v138
  %140 = vmatprep.mubr.f32.mxu0 0.0
  %141 = vmatmul.mubr.f32.gmra.mrb[0].mxu0 %v44
  %v142 = vpop.f32.mrb[0].mxu0
  %v143 = vadd.f32 0.0, %v142
  %v144 = vpop.f32.mrb[0].mxu0
  %v145 = vadd.f32 0.0, %v144
  %146 = vmatprep.mubr.f32.mxu0 0.0
  %147 = vmatmul.mubr.f32.gmra.mrb[0].mxu0 %v47
  %v148 = vpop.f32.mrb[0].mxu0
  %v149 = vadd.f32 0.0, %v148
  %v150 = vpop.f32.mrb[0].mxu0
  %v151 = vadd.f32 0.0, %v150
  %152 = vmatprep.mubr.f32.mxu0 0.0
  %153 = vmatmul.mubr.f32.gmra.mrb[0].mxu0 %v50
  %v154 = vpop.f32.mrb[0].mxu0
  %v155 = vadd.f32 0.0, %v154
  %v156 = vpop.f32.mrb[0].mxu0
  %v157 = vadd.f32 0.0, %v156
  %158 = vmatprep.mubr.f32.mxu0 0.0
  %159 = vmatmul.mubr.f32.gmra.mrb[0].mxu0 %v53
  %v160 = vpop.f32.mrb[0].mxu0
  %v161 = vadd.f32 0.0, %v160
  %v162 = vpop.f32.mrb[0].mxu0
  %v163 = vadd.f32 0.0, %v162
  %164 = vmatprep.mubr.f32.mxu0 0.0
  %165 = vmatmul.mubr.f32.gmra.mrb[0].mxu0 %v56
  %v166 = vpop.f32.mrb[0].mxu0
  %v167 = vadd.f32 0.0, %v166
  %v168 = vpop.f32.mrb[0].mxu0
  %v169 = vadd.f32 0.0, %v168
  %170 = vdwg.mxu0
  %171 = vst [vmem:[#allocation2] sm:$0xff] %v125
  %172 = vst [vmem:[#allocation2 + $0x8] sm:$0xff] %v127
  %173 = vst [vmem:[#allocation2 + $0x10] sm:$0xff] %v131
  %174 = vst [vmem:[#allocation2 + $0x18] sm:$0xff] %v133
  %175 = vst [vmem:[#allocation2 + $0x20] sm:$0xff] %v137
  %176 = vst [vmem:[#allocation2 + $0x28] sm:$0xff] %v139
  %177 = vst [vmem:[#allocation2 + $0x30] sm:$0xff] %v143
  %178 = vst [vmem:[#allocation2 + $0x38] sm:$0xff] %v145
  %179 = vst [vmem:[#allocation2 + $0x40] sm:$0xff] %v149
  %180 = vst [vmem:[#allocation2 + $0x48] sm:$0xff] %v151
  %181 = vst [vmem:[#allocation2 + $0x50] sm:$0xff] %v155
  %182 = vst [vmem:[#allocation2 + $0x58] sm:$0xff] %v157
  %183 = vst [vmem:[#allocation2 + $0x60] sm:$0xff] %v161
  %184 = vst [vmem:[#allocation2 + $0x68] sm:$0xff] %v163
  %185 = vst [vmem:[#allocation2 + $0x70] sm:$0xff] %v167
  %186 = vst [vmem:[#allocation2 + $0x78] sm:$0xff] %v169
  %v187 = vlaneseq
  %v188 = vand.u32 %v187, 127
  %v189 = vadd.s32 %v188, 128
  %vm190 = vcmp.ge.s32.totalorder %v188, 64
  %vm191 = vcmp.ge.s32.totalorder %v189, 64
  %vm192 = vcmp.lt.s32.totalorder %v188, 128
  %vm193 = vcmp.lt.s32.totalorder %v189, 128
  %vm194 = vmand %vm190, %vm192
  %vm195 = vmand %vm191, %vm193
  %v196 = vsel %vm194, 2.0, 1.0
  %v197 = vsel %vm195, 2.0, 1.0
  %v198 = vsel %vm194, -1.0, 0.0
  %v199 = vsel %vm195, -1.0, 0.0
  %vm200 = vcmp.lt.s32.totalorder %v188, 64
  %v201 = vld [vmem:[%s2] sm:$0xff]
  %v202 = vld [vmem:[%s2 + $0x8] sm:$0xff]
  %v203 = vld [vmem:[%s2 + $0x10] sm:$0xff]
  %v204 = vld [vmem:[%s2 + $0x18] sm:$0xff]
  %v205 = vld [vmem:[%s2 + $0x20] sm:$0xff]
  %v206 = vld [vmem:[%s2 + $0x28] sm:$0xff]
  %v207 = vld [vmem:[%s2 + $0x30] sm:$0xff]
  %v208 = vld [vmem:[%s2 + $0x38] sm:$0xff]
  %v209 = vld [vmem:[#allocation2] sm:$0xff]
  %v210 = vld [vmem:[#allocation2 + $0x8] sm:$0xff]
  %v211 = vxor.u32 %v209, 2147483648
  %v212 = vxor.u32 %v210, 2147483648
  %v213 = vmul.f32 %v211, 1.442695
  %v214 = vpow.pop %v213
  %v215 = vmul.f32 %v212, 1.442695
  %v216 = vpow.pop %v215
  %v217 = vadd.f32 %v214, 1.0
  %v218 = vadd.f32 %v216, 1.0
  %v219 = vrcp.pop %v217
  %v220 = vmul.f32 1.0, %v219
  %v221 = vrcp.pop %v218
  %v222 = vmul.f32 1.0, %v221
  %v223 = vmul.f32 %v220, %v196
  %v224 = vmul.f32 %v222, %v197
  %v225 = vadd.f32 %v223, %v198
  %v226 = vadd.f32 %v224, %v199
  %v227 = vsel %vm200, 0.0, %v225
  %v228 = vmul.f32 %v226, %v227
  %229 = vrot.lane.b32.xlu0 %v228, 64
  %v230 = vpop.permute.xlu0 %229
  %v231 = vadd.f32 %v228, %v230
  %v232 = vtanh.pop %v231
  %v233 = vmul.f32 %v225, %v232
  %v234 = vld [vmem:[#allocation2 + $0x10] sm:$0xff]
  %v235 = vld [vmem:[#allocation2 + $0x18] sm:$0xff]
  %v236 = vpack.c.bf16 %v233, %v233
  %v245 = vunpack.c.l.b16 %v201
  %v246 = vunpack.c.h.b16 %v201
  %v247 = vunpack.c.l.b16 %v202
  %v248 = vunpack.c.h.b16 %v202
  %v249 = vunpack.c.l.b16 %v203
  %v250 = vunpack.c.h.b16 %v203
  %v251 = vunpack.c.l.b16 %v204
  %v252 = vunpack.c.h.b16 %v204
  %v253 = vunpack.c.l.b16 %v205
  %v254 = vunpack.c.h.b16 %v205
  %v255 = vunpack.c.l.b16 %v206
  %v256 = vunpack.c.h.b16 %v206
  %v257 = vunpack.c.l.b16 %v207
  %v258 = vunpack.c.h.b16 %v207
  %v259 = vunpack.c.l.b16 %v208
  %v260 = vunpack.c.h.b16 %v208
  %v261 = vpack.c.b16 %v247, %v245
  %v262 = vpack.c.b16 %v248, %v246
  %v263 = vpack.c.b16 %v251, %v249
  %v264 = vpack.c.b16 %v252, %v250
  %v265 = vpack.c.b16 %v255, %v253
  %v266 = vpack.c.b16 %v256, %v254
  %v267 = vpack.c.b16 %v259, %v257
  %v268 = vpack.c.b16 %v260, %v258
  %vm277 = vcmask 523264
  %v279 = vsel %vm277, %v236, 0
  %281 = vmatprep.subr.bf16.mxu0 %v262
  %282 = vmatpush1.bf16.msra.mxu0 %v261
  %283 = vmatprep.subr.bf16.mxu0 %v264
  %284 = vmatpush1.bf16.msra.mxu0 %v263
  %285 = vmatprep.subr.bf16.mxu0 %v266
  %286 = vmatpush1.bf16.msra.mxu0 %v265
  %287 = vmatprep.subr.bf16.mxu0 %v268
  %288 = vmatpush1.bf16.msra.mxu0 %v267
  %289 = vmatprep.subr.bf16.mxu0 0
  %290 = vmatpush1.bf16.msra.mxu0 0
  %291 = vmatprep.subr.bf16.mxu0 0
  %292 = vmatpush1.bf16.msra.mxu0 0
  %293 = vmatprep.subr.bf16.mxu0 0
  %294 = vmatpush1.bf16.msra.mxu0 0
  %295 = vmatprep.subr.bf16.mxu0 0
  %296 = vmatpush1.bf16.msra.mxu0 0
  %297 = vmatprep.subr.bf16.mxu0 0
  %298 = vmatpush1.bf16.msra.mxu0 0
  %299 = vmatprep.subr.bf16.mxu0 0
  %300 = vmatpush1.bf16.msra.mxu0 0
  %301 = vmatprep.subr.bf16.mxu0 0
  %302 = vmatpush1.bf16.msra.mxu0 0
  %303 = vmatprep.subr.bf16.mxu0 0
  %304 = vmatpush1.bf16.msra.mxu0 0
  %305 = vmatprep.subr.bf16.mxu0 0
  %306 = vmatpush1.bf16.msra.mxu0 0
  %307 = vmatprep.subr.bf16.mxu0 0
  %308 = vmatpush1.bf16.msra.mxu0 0
  %309 = vmatprep.subr.bf16.mxu0 0
  %310 = vmatpush1.bf16.msra.mxu0 0
  %311 = vmatprep.subr.bf16.mxu0 0
  %312 = vmatpush1.bf16.msra.mxu0 0
  %313 = vmatprep.mubr.bf16.mxu0 0
  %314 = vmatmul.mubr.bf16.gmra.mrb[0].mxu0 %v279
  %v315 = vpop.f32.mrb[0].mxu0
  %v316 = vadd.f32 0.0, %v315
  %v317 = vpop.f32.mrb[0].mxu0
  %v318 = vadd.f32 0.0, %v317
  %v319 = vpop.f32.mrb[0].mxu0
  %v320 = vpop.f32.mrb[0].mxu0
  %321 = vdwg.mxu0
  %v322 = vadd.f32 %v234, %v316
  %v323 = vadd.f32 %v235, %v318
  %v324 = vxor.u32 %v322, 2147483648
  %v325 = vxor.u32 %v323, 2147483648
  %v326 = vmul.f32 %v324, 1.442695
  %v327 = vpow.pop %v326
  %v328 = vmul.f32 %v325, 1.442695
  %v329 = vpow.pop %v328
  %v330 = vadd.f32 %v327, 1.0
  %v331 = vadd.f32 %v329, 1.0
  %v332 = vrcp.pop %v330
  %v333 = vmul.f32 1.0, %v332
  %v334 = vrcp.pop %v331
  %v335 = vmul.f32 1.0, %v334
  %v336 = vmul.f32 %v333, %v196
  %v337 = vmul.f32 %v335, %v197
  %v338 = vadd.f32 %v336, %v198
  %v339 = vadd.f32 %v337, %v199
  %v340 = vsel %vm200, %v231, %v338
  %v341 = vmul.f32 %v339, %v340
  %342 = vrot.lane.b32.xlu0 %v341, 64
  %v343 = vpop.permute.xlu0 %342
  %v344 = vadd.f32 %v341, %v343
  %v345 = vtanh.pop %v344
  %v346 = vmul.f32 %v338, %v345
  %v347 = vld [vmem:[#allocation2 + $0x20] sm:$0xff]
  %v348 = vld [vmem:[#allocation2 + $0x28] sm:$0xff]
  %v349 = vpack.c.bf16 %v346, %v346
  %v351 = vsel %vm277, %v349, 0
  %353 = vmatprep.subr.bf16.mxu0 %v262
  %354 = vmatpush1.bf16.msra.mxu0 %v261
  %355 = vmatprep.subr.bf16.mxu0 %v264
  %356 = vmatpush1.bf16.msra.mxu0 %v263
  %357 = vmatprep.subr.bf16.mxu0 %v266
  %358 = vmatpush1.bf16.msra.mxu0 %v265
  %359 = vmatprep.subr.bf16.mxu0 %v268
  %360 = vmatpush1.bf16.msra.mxu0 %v267
  %361 = vmatprep.subr.bf16.mxu0 0
  %362 = vmatpush1.bf16.msra.mxu0 0
  %363 = vmatprep.subr.bf16.mxu0 0
  %364 = vmatpush1.bf16.msra.mxu0 0
  %365 = vmatprep.subr.bf16.mxu0 0
  %366 = vmatpush1.bf16.msra.mxu0 0
  %367 = vmatprep.subr.bf16.mxu0 0
  %368 = vmatpush1.bf16.msra.mxu0 0
  %369 = vmatprep.subr.bf16.mxu0 0
  %370 = vmatpush1.bf16.msra.mxu0 0
  %371 = vmatprep.subr.bf16.mxu0 0
  %372 = vmatpush1.bf16.msra.mxu0 0
  %373 = vmatprep.subr.bf16.mxu0 0
  %374 = vmatpush1.bf16.msra.mxu0 0
  %375 = vmatprep.subr.bf16.mxu0 0
  %376 = vmatpush1.bf16.msra.mxu0 0
  %377 = vmatprep.subr.bf16.mxu0 0
  %378 = vmatpush1.bf16.msra.mxu0 0
  %379 = vmatprep.subr.bf16.mxu0 0
  %380 = vmatpush1.bf16.msra.mxu0 0
  %381 = vmatprep.subr.bf16.mxu0 0
  %382 = vmatpush1.bf16.msra.mxu0 0
  %383 = vmatprep.subr.bf16.mxu0 0
  %384 = vmatpush1.bf16.msra.mxu0 0
  %385 = vmatprep.mubr.bf16.mxu0 0
  %386 = vmatmul.mubr.bf16.gmra.mrb[0].mxu0 %v351
  %v387 = vpop.f32.mrb[0].mxu0
  %v388 = vadd.f32 0.0, %v387
  %v389 = vpop.f32.mrb[0].mxu0
  %v390 = vadd.f32 0.0, %v389
  %v391 = vpop.f32.mrb[0].mxu0
  %v392 = vpop.f32.mrb[0].mxu0
  %393 = vdwg.mxu0
  %v394 = vadd.f32 %v347, %v388
  %v395 = vadd.f32 %v348, %v390
  %v396 = vxor.u32 %v394, 2147483648
  %v397 = vxor.u32 %v395, 2147483648
  %v398 = vmul.f32 %v396, 1.442695
  %v399 = vpow.pop %v398
  %v400 = vmul.f32 %v397, 1.442695
  %v401 = vpow.pop %v400
  %v402 = vadd.f32 %v399, 1.0
  %v403 = vadd.f32 %v401, 1.0
  %v404 = vrcp.pop %v402
  %v405 = vmul.f32 1.0, %v404
  %v406 = vrcp.pop %v403
  %v407 = vmul.f32 1.0, %v406
  %v408 = vmul.f32 %v405, %v196
  %v409 = vmul.f32 %v407, %v197
  %v410 = vadd.f32 %v408, %v198
  %v411 = vadd.f32 %v409, %v199
  %v412 = vsel %vm200, %v344, %v410
  %v413 = vmul.f32 %v411, %v412
  %414 = vrot.lane.b32.xlu0 %v413, 64
  %v415 = vpop.permute.xlu0 %414
  %v416 = vadd.f32 %v413, %v415
  %v417 = vtanh.pop %v416
  %v418 = vmul.f32 %v410, %v417
  %v419 = vld [vmem:[#allocation2 + $0x30] sm:$0xff]
  %v420 = vld [vmem:[#allocation2 + $0x38] sm:$0xff]
  %v421 = vpack.c.bf16 %v418, %v418
  %v423 = vsel %vm277, %v421, 0
  %425 = vmatprep.subr.bf16.mxu0 %v262
  %426 = vmatpush1.bf16.msra.mxu0 %v261
  %427 = vmatprep.subr.bf16.mxu0 %v264
  %428 = vmatpush1.bf16.msra.mxu0 %v263
  %429 = vmatprep.subr.bf16.mxu0 %v266
  %430 = vmatpush1.bf16.msra.mxu0 %v265
  %431 = vmatprep.subr.bf16.mxu0 %v268
  %432 = vmatpush1.bf16.msra.mxu0 %v267
  %433 = vmatprep.subr.bf16.mxu0 0
  %434 = vmatpush1.bf16.msra.mxu0 0
  %435 = vmatprep.subr.bf16.mxu0 0
  %436 = vmatpush1.bf16.msra.mxu0 0
  %437 = vmatprep.subr.bf16.mxu0 0
  %438 = vmatpush1.bf16.msra.mxu0 0
  %439 = vmatprep.subr.bf16.mxu0 0
  %440 = vmatpush1.bf16.msra.mxu0 0
  %441 = vmatprep.subr.bf16.mxu0 0
  %442 = vmatpush1.bf16.msra.mxu0 0
  %443 = vmatprep.subr.bf16.mxu0 0
  %444 = vmatpush1.bf16.msra.mxu0 0
  %445 = vmatprep.subr.bf16.mxu0 0
  %446 = vmatpush1.bf16.msra.mxu0 0
  %447 = vmatprep.subr.bf16.mxu0 0
  %448 = vmatpush1.bf16.msra.mxu0 0
  %449 = vmatprep.subr.bf16.mxu0 0
  %450 = vmatpush1.bf16.msra.mxu0 0
  %451 = vmatprep.subr.bf16.mxu0 0
  %452 = vmatpush1.bf16.msra.mxu0 0
  %453 = vmatprep.subr.bf16.mxu0 0
  %454 = vmatpush1.bf16.msra.mxu0 0
  %455 = vmatprep.subr.bf16.mxu0 0
  %456 = vmatpush1.bf16.msra.mxu0 0
  %457 = vmatprep.mubr.bf16.mxu0 0
  %458 = vmatmul.mubr.bf16.gmra.mrb[0].mxu0 %v423
  %v459 = vpop.f32.mrb[0].mxu0
  %v460 = vadd.f32 0.0, %v459
  %v461 = vpop.f32.mrb[0].mxu0
  %v462 = vadd.f32 0.0, %v461
  %v463 = vpop.f32.mrb[0].mxu0
  %v464 = vpop.f32.mrb[0].mxu0
  %465 = vdwg.mxu0
  %v466 = vadd.f32 %v419, %v460
  %v467 = vadd.f32 %v420, %v462
  %v468 = vxor.u32 %v466, 2147483648
  %v469 = vxor.u32 %v467, 2147483648
  %v470 = vmul.f32 %v468, 1.442695
  %v471 = vpow.pop %v470
  %v472 = vmul.f32 %v469, 1.442695
  %v473 = vpow.pop %v472
  %v474 = vadd.f32 %v471, 1.0
  %v475 = vadd.f32 %v473, 1.0
  %v476 = vrcp.pop %v474
  %v477 = vmul.f32 1.0, %v476
  %v478 = vrcp.pop %v475
  %v479 = vmul.f32 1.0, %v478
  %v480 = vmul.f32 %v477, %v196
  %v481 = vmul.f32 %v479, %v197
  %v482 = vadd.f32 %v480, %v198
  %v483 = vadd.f32 %v481, %v199
  %v484 = vsel %vm200, %v416, %v482
  %v485 = vmul.f32 %v483, %v484
  %486 = vrot.lane.b32.xlu0 %v485, 64
  %v487 = vpop.permute.xlu0 %486
  %v488 = vadd.f32 %v485, %v487
  %v489 = vtanh.pop %v488
  %v490 = vmul.f32 %v482, %v489
  %v491 = vld [vmem:[#allocation2 + $0x40] sm:$0xff]
  %v492 = vld [vmem:[#allocation2 + $0x48] sm:$0xff]
  %v493 = vpack.c.bf16 %v490, %v490
  %v495 = vsel %vm277, %v493, 0
  %497 = vmatprep.subr.bf16.mxu0 %v262
  %498 = vmatpush1.bf16.msra.mxu0 %v261
  %499 = vmatprep.subr.bf16.mxu0 %v264
  %500 = vmatpush1.bf16.msra.mxu0 %v263
  %501 = vmatprep.subr.bf16.mxu0 %v266
  %502 = vmatpush1.bf16.msra.mxu0 %v265
  %503 = vmatprep.subr.bf16.mxu0 %v268
  %504 = vmatpush1.bf16.msra.mxu0 %v267
  %505 = vmatprep.subr.bf16.mxu0 0
  %506 = vmatpush1.bf16.msra.mxu0 0
  %507 = vmatprep.subr.bf16.mxu0 0
  %508 = vmatpush1.bf16.msra.mxu0 0
  %509 = vmatprep.subr.bf16.mxu0 0
  %510 = vmatpush1.bf16.msra.mxu0 0
  %511 = vmatprep.subr.bf16.mxu0 0
  %512 = vmatpush1.bf16.msra.mxu0 0
  %513 = vmatprep.subr.bf16.mxu0 0
  %514 = vmatpush1.bf16.msra.mxu0 0
  %515 = vmatprep.subr.bf16.mxu0 0
  %516 = vmatpush1.bf16.msra.mxu0 0
  %517 = vmatprep.subr.bf16.mxu0 0
  %518 = vmatpush1.bf16.msra.mxu0 0
  %519 = vmatprep.subr.bf16.mxu0 0
  %520 = vmatpush1.bf16.msra.mxu0 0
  %521 = vmatprep.subr.bf16.mxu0 0
  %522 = vmatpush1.bf16.msra.mxu0 0
  %523 = vmatprep.subr.bf16.mxu0 0
  %524 = vmatpush1.bf16.msra.mxu0 0
  %525 = vmatprep.subr.bf16.mxu0 0
  %526 = vmatpush1.bf16.msra.mxu0 0
  %527 = vmatprep.subr.bf16.mxu0 0
  %528 = vmatpush1.bf16.msra.mxu0 0
  %529 = vmatprep.mubr.bf16.mxu0 0
  %530 = vmatmul.mubr.bf16.gmra.mrb[0].mxu0 %v495
  %v531 = vpop.f32.mrb[0].mxu0
  %v532 = vadd.f32 0.0, %v531
  %v533 = vpop.f32.mrb[0].mxu0
  %v534 = vadd.f32 0.0, %v533
  %v535 = vpop.f32.mrb[0].mxu0
  %v536 = vpop.f32.mrb[0].mxu0
  %537 = vdwg.mxu0
  %v538 = vadd.f32 %v491, %v532
  %v539 = vadd.f32 %v492, %v534
  %v540 = vxor.u32 %v538, 2147483648
  %v541 = vxor.u32 %v539, 2147483648
  %v542 = vmul.f32 %v540, 1.442695
  %v543 = vpow.pop %v542
  %v544 = vmul.f32 %v541, 1.442695
  %v545 = vpow.pop %v544
  %v546 = vadd.f32 %v543, 1.0
  %v547 = vadd.f32 %v545, 1.0
  %v548 = vrcp.pop %v546
  %v549 = vmul.f32 1.0, %v548
  %v550 = vrcp.pop %v547
  %v551 = vmul.f32 1.0, %v550
  %v552 = vmul.f32 %v549, %v196
  %v553 = vmul.f32 %v551, %v197
  %v554 = vadd.f32 %v552, %v198
  %v555 = vadd.f32 %v553, %v199
  %v556 = vsel %vm200, %v488, %v554
  %v557 = vmul.f32 %v555, %v556
  %558 = vrot.lane.b32.xlu0 %v557, 64
  %v559 = vpop.permute.xlu0 %558
  %v560 = vadd.f32 %v557, %v559
  %v561 = vtanh.pop %v560
  %v562 = vmul.f32 %v554, %v561
  %v563 = vld [vmem:[#allocation2 + $0x50] sm:$0xff]
  %v564 = vld [vmem:[#allocation2 + $0x58] sm:$0xff]
  %v565 = vpack.c.bf16 %v562, %v562
  %v567 = vsel %vm277, %v565, 0
  %569 = vmatprep.subr.bf16.mxu0 %v262
  %570 = vmatpush1.bf16.msra.mxu0 %v261
  %571 = vmatprep.subr.bf16.mxu0 %v264
  %572 = vmatpush1.bf16.msra.mxu0 %v263
  %573 = vmatprep.subr.bf16.mxu0 %v266
  %574 = vmatpush1.bf16.msra.mxu0 %v265
  %575 = vmatprep.subr.bf16.mxu0 %v268
  %576 = vmatpush1.bf16.msra.mxu0 %v267
  %577 = vmatprep.subr.bf16.mxu0 0
  %578 = vmatpush1.bf16.msra.mxu0 0
  %579 = vmatprep.subr.bf16.mxu0 0
  %580 = vmatpush1.bf16.msra.mxu0 0
  %581 = vmatprep.subr.bf16.mxu0 0
  %582 = vmatpush1.bf16.msra.mxu0 0
  %583 = vmatprep.subr.bf16.mxu0 0
  %584 = vmatpush1.bf16.msra.mxu0 0
  %585 = vmatprep.subr.bf16.mxu0 0
  %586 = vmatpush1.bf16.msra.mxu0 0
  %587 = vmatprep.subr.bf16.mxu0 0
  %588 = vmatpush1.bf16.msra.mxu0 0
  %589 = vmatprep.subr.bf16.mxu0 0
  %590 = vmatpush1.bf16.msra.mxu0 0
  %591 = vmatprep.subr.bf16.mxu0 0
  %592 = vmatpush1.bf16.msra.mxu0 0
  %593 = vmatprep.subr.bf16.mxu0 0
  %594 = vmatpush1.bf16.msra.mxu0 0
  %595 = vmatprep.subr.bf16.mxu0 0
  %596 = vmatpush1.bf16.msra.mxu0 0
  %597 = vmatprep.subr.bf16.mxu0 0
  %598 = vmatpush1.bf16.msra.mxu0 0
  %599 = vmatprep.subr.bf16.mxu0 0
  %600 = vmatpush1.bf16.msra.mxu0 0
  %601 = vmatprep.mubr.bf16.mxu0 0
  %602 = vmatmul.mubr.bf16.gmra.mrb[0].mxu0 %v567
  %v603 = vpop.f32.mrb[0].mxu0
  %v604 = vadd.f32 0.0, %v603
  %v605 = vpop.f32.mrb[0].mxu0
  %v606 = vadd.f32 0.0, %v605
  %v607 = vpop.f32.mrb[0].mxu0
  %v608 = vpop.f32.mrb[0].mxu0
  %609 = vdwg.mxu0
  %v610 = vadd.f32 %v563, %v604
  %v611 = vadd.f32 %v564, %v606
  %v612 = vxor.u32 %v610, 2147483648
  %v613 = vxor.u32 %v611, 2147483648
  %v614 = vmul.f32 %v612, 1.442695
  %v615 = vpow.pop %v614
  %v616 = vmul.f32 %v613, 1.442695
  %v617 = vpow.pop %v616
  %v618 = vadd.f32 %v615, 1.0
  %v619 = vadd.f32 %v617, 1.0
  %v620 = vrcp.pop %v618
  %v621 = vmul.f32 1.0, %v620
  %v622 = vrcp.pop %v619
  %v623 = vmul.f32 1.0, %v622
  %v624 = vmul.f32 %v621, %v196
  %v625 = vmul.f32 %v623, %v197
  %v626 = vadd.f32 %v624, %v198
  %v627 = vadd.f32 %v625, %v199
  %v628 = vsel %vm200, %v560, %v626
  %v629 = vmul.f32 %v627, %v628
  %630 = vrot.lane.b32.xlu0 %v629, 64
  %v631 = vpop.permute.xlu0 %630
  %v632 = vadd.f32 %v629, %v631
  %v633 = vtanh.pop %v632
  %v634 = vmul.f32 %v626, %v633
  %v635 = vld [vmem:[#allocation2 + $0x60] sm:$0xff]
  %v636 = vld [vmem:[#allocation2 + $0x68] sm:$0xff]
  %v637 = vpack.c.bf16 %v634, %v634
  %v639 = vsel %vm277, %v637, 0
  %641 = vmatprep.subr.bf16.mxu0 %v262
  %642 = vmatpush1.bf16.msra.mxu0 %v261
  %643 = vmatprep.subr.bf16.mxu0 %v264
  %644 = vmatpush1.bf16.msra.mxu0 %v263
  %645 = vmatprep.subr.bf16.mxu0 %v266
  %646 = vmatpush1.bf16.msra.mxu0 %v265
  %647 = vmatprep.subr.bf16.mxu0 %v268
  %648 = vmatpush1.bf16.msra.mxu0 %v267
  %649 = vmatprep.subr.bf16.mxu0 0
  %650 = vmatpush1.bf16.msra.mxu0 0
  %651 = vmatprep.subr.bf16.mxu0 0
  %652 = vmatpush1.bf16.msra.mxu0 0
  %653 = vmatprep.subr.bf16.mxu0 0
  %654 = vmatpush1.bf16.msra.mxu0 0
  %655 = vmatprep.subr.bf16.mxu0 0
  %656 = vmatpush1.bf16.msra.mxu0 0
  %657 = vmatprep.subr.bf16.mxu0 0
  %658 = vmatpush1.bf16.msra.mxu0 0
  %659 = vmatprep.subr.bf16.mxu0 0
  %660 = vmatpush1.bf16.msra.mxu0 0
  %661 = vmatprep.subr.bf16.mxu0 0
  %662 = vmatpush1.bf16.msra.mxu0 0
  %663 = vmatprep.subr.bf16.mxu0 0
  %664 = vmatpush1.bf16.msra.mxu0 0
  %665 = vmatprep.subr.bf16.mxu0 0
  %666 = vmatpush1.bf16.msra.mxu0 0
  %667 = vmatprep.subr.bf16.mxu0 0
  %668 = vmatpush1.bf16.msra.mxu0 0
  %669 = vmatprep.subr.bf16.mxu0 0
  %670 = vmatpush1.bf16.msra.mxu0 0
  %671 = vmatprep.subr.bf16.mxu0 0
  %672 = vmatpush1.bf16.msra.mxu0 0
  %673 = vmatprep.mubr.bf16.mxu0 0
  %674 = vmatmul.mubr.bf16.gmra.mrb[0].mxu0 %v639
  %v675 = vpop.f32.mrb[0].mxu0
  %v676 = vadd.f32 0.0, %v675
  %v677 = vpop.f32.mrb[0].mxu0
  %v678 = vadd.f32 0.0, %v677
  %v679 = vpop.f32.mrb[0].mxu0
  %v680 = vpop.f32.mrb[0].mxu0
  %681 = vdwg.mxu0
  %v682 = vadd.f32 %v635, %v676
  %v683 = vadd.f32 %v636, %v678
  %v684 = vxor.u32 %v682, 2147483648
  %v685 = vxor.u32 %v683, 2147483648
  %v686 = vmul.f32 %v684, 1.442695
  %v687 = vpow.pop %v686
  %v688 = vmul.f32 %v685, 1.442695
  %v689 = vpow.pop %v688
  %v690 = vadd.f32 %v687, 1.0
  %v691 = vadd.f32 %v689, 1.0
  %v692 = vrcp.pop %v690
  %v693 = vmul.f32 1.0, %v692
  %v694 = vrcp.pop %v691
  %v695 = vmul.f32 1.0, %v694
  %v696 = vmul.f32 %v693, %v196
  %v697 = vmul.f32 %v695, %v197
  %v698 = vadd.f32 %v696, %v198
  %v699 = vadd.f32 %v697, %v199
  %v700 = vsel %vm200, %v632, %v698
  %v701 = vmul.f32 %v699, %v700
  %702 = vrot.lane.b32.xlu0 %v701, 64
  %v703 = vpop.permute.xlu0 %702
  %v704 = vadd.f32 %v701, %v703
  %v705 = vtanh.pop %v704
  %v706 = vmul.f32 %v698, %v705
  %v707 = vld [vmem:[#allocation2 + $0x70] sm:$0xff]
  %v708 = vld [vmem:[#allocation2 + $0x78] sm:$0xff]
  %v709 = vpack.c.bf16 %v706, %v706
  %v711 = vsel %vm277, %v709, 0
  %713 = vmatprep.subr.bf16.mxu0 %v262
  %714 = vmatpush1.bf16.msra.mxu0 %v261
  %715 = vmatprep.subr.bf16.mxu0 %v264
  %716 = vmatpush1.bf16.msra.mxu0 %v263
  %717 = vmatprep.subr.bf16.mxu0 %v266
  %718 = vmatpush1.bf16.msra.mxu0 %v265
  %719 = vmatprep.subr.bf16.mxu0 %v268
  %720 = vmatpush1.bf16.msra.mxu0 %v267
  %721 = vmatprep.subr.bf16.mxu0 0
  %722 = vmatpush1.bf16.msra.mxu0 0
  %723 = vmatprep.subr.bf16.mxu0 0
  %724 = vmatpush1.bf16.msra.mxu0 0
  %725 = vmatprep.subr.bf16.mxu0 0
  %726 = vmatpush1.bf16.msra.mxu0 0
  %727 = vmatprep.subr.bf16.mxu0 0
  %728 = vmatpush1.bf16.msra.mxu0 0
  %729 = vmatprep.subr.bf16.mxu0 0
  %730 = vmatpush1.bf16.msra.mxu0 0
  %731 = vmatprep.subr.bf16.mxu0 0
  %732 = vmatpush1.bf16.msra.mxu0 0
  %733 = vmatprep.subr.bf16.mxu0 0
  %734 = vmatpush1.bf16.msra.mxu0 0
  %735 = vmatprep.subr.bf16.mxu0 0
  %736 = vmatpush1.bf16.msra.mxu0 0
  %737 = vmatprep.subr.bf16.mxu0 0
  %738 = vmatpush1.bf16.msra.mxu0 0
  %739 = vmatprep.subr.bf16.mxu0 0
  %740 = vmatpush1.bf16.msra.mxu0 0
  %741 = vmatprep.subr.bf16.mxu0 0
  %742 = vmatpush1.bf16.msra.mxu0 0
  %743 = vmatprep.subr.bf16.mxu0 0
  %744 = vmatpush1.bf16.msra.mxu0 0
  %745 = vmatprep.mubr.bf16.mxu0 0
  %746 = vmatmul.mubr.bf16.gmra.mrb[0].mxu0 %v711
  %v747 = vpop.f32.mrb[0].mxu0
  %v748 = vadd.f32 0.0, %v747
  %v749 = vpop.f32.mrb[0].mxu0
  %v750 = vadd.f32 0.0, %v749
  %v751 = vpop.f32.mrb[0].mxu0
  %v752 = vpop.f32.mrb[0].mxu0
  %753 = vdwg.mxu0
  %v754 = vadd.f32 %v707, %v748
  %v755 = vadd.f32 %v708, %v750
  %v756 = vxor.u32 %v754, 2147483648
  %v757 = vxor.u32 %v755, 2147483648
  %v758 = vmul.f32 %v756, 1.442695
  %v759 = vpow.pop %v758
  %v760 = vmul.f32 %v757, 1.442695
  %v761 = vpow.pop %v760
  %v762 = vadd.f32 %v759, 1.0
  %v763 = vadd.f32 %v761, 1.0
  %v764 = vrcp.pop %v762
  %v765 = vmul.f32 1.0, %v764
  %v766 = vrcp.pop %v763
  %v767 = vmul.f32 1.0, %v766
  %v768 = vmul.f32 %v765, %v196
  %v769 = vmul.f32 %v767, %v197
  %v770 = vadd.f32 %v768, %v198
  %v771 = vadd.f32 %v769, %v199
  %v772 = vsel %vm200, %v704, %v770
  %v773 = vmul.f32 %v771, %v772
  %774 = vrot.lane.b32.xlu0 %v773, 64
  %v775 = vpop.permute.xlu0 %774
  %v776 = vadd.f32 %v773, %v775
  %v777 = vtanh.pop %v776
  %v778 = vmul.f32 %v770, %v777
  %v779 = vld [vmem:[%s3] sm:$0xff]
  %v780 = vld [vmem:[%s3 + $0x8] sm:$0xff]
  %v781 = vld [vmem:[%s3 + $0x10] sm:$0xff]
  %v782 = vld [vmem:[%s3 + $0x18] sm:$0xff]
  %v783 = vld [vmem:[%s3 + $0x20] sm:$0xff]
  %v784 = vld [vmem:[%s3 + $0x28] sm:$0xff]
  %v785 = vld [vmem:[%s3 + $0x30] sm:$0xff]
  %v786 = vld [vmem:[%s3 + $0x38] sm:$0xff]
  %v787 = vld [vmem:[%s4] sm:$0x1]
  %v789 = vlaneseq
  %v790 = vshrl.u32 %v789, 7
  %v791 = vsub.s32 0, %v790
  %v792 = vrot.slane %v787, %v791
  %v795 = vsel %vm277, %v778, 0
  %797 = vmatprep.subr.mxu0 0.0
  %798 = vmatpush1.msra.mxu0 %v779
  %799 = vmatprep.subr.mxu0 0.0
  %800 = vmatpush1.msra.mxu0 %v780
  %801 = vmatprep.subr.mxu0 0.0
  %802 = vmatpush1.msra.mxu0 %v781
  %803 = vmatprep.subr.mxu0 0.0
  %804 = vmatpush1.msra.mxu0 %v782
  %805 = vmatprep.subr.mxu0 0.0
  %806 = vmatpush1.msra.mxu0 %v783
  %807 = vmatprep.subr.mxu0 0.0
  %808 = vmatpush1.msra.mxu0 %v784
  %809 = vmatprep.subr.mxu0 0.0
  %810 = vmatpush1.msra.mxu0 %v785
  %811 = vmatprep.subr.mxu0 0.0
  %812 = vmatpush1.msra.mxu0 %v786
  %813 = vmatprep.subr.mxu0 0.0
  %814 = vmatpush1.msra.mxu0 0.0
  %815 = vmatprep.subr.mxu0 0.0
  %816 = vmatpush1.msra.mxu0 0.0
  %817 = vmatprep.subr.mxu0 0.0
  %818 = vmatpush1.msra.mxu0 0.0
  %819 = vmatprep.subr.mxu0 0.0
  %820 = vmatpush1.msra.mxu0 0.0
  %821 = vmatprep.subr.mxu0 0.0
  %822 = vmatpush1.msra.mxu0 0.0
  %823 = vmatprep.subr.mxu0 0.0
  %824 = vmatpush1.msra.mxu0 0.0
  %825 = vmatprep.subr.mxu0 0.0
  %826 = vmatpush1.msra.mxu0 0.0
  %827 = vmatprep.subr.mxu0 0.0
  %828 = vmatpush1.msra.mxu0 0.0
  %829 = vmatprep.subr.mxu0 0.0
  %830 = vmatpush1.msra.mxu0 0.0
  %831 = vmatprep.subr.mxu0 0.0
  %832 = vmatpush1.msra.mxu0 0.0
  %833 = vmatprep.subr.mxu0 0.0
  %834 = vmatpush1.msra.mxu0 0.0
  %835 = vmatprep.subr.mxu0 0.0
  %836 = vmatpush1.msra.mxu0 0.0
  %837 = vmatprep.subr.mxu0 0.0
  %838 = vmatpush1.msra.mxu0 0.0
  %839 = vmatprep.subr.mxu0 0.0
  %840 = vmatpush1.msra.mxu0 0.0
  %841 = vmatprep.subr.mxu0 0.0
  %842 = vmatpush1.msra.mxu0 0.0
  %843 = vmatprep.subr.mxu0 0.0
  %844 = vmatpush1.msra.mxu0 0.0
  %845 = vmatprep.subr.mxu0 0.0
  %846 = vmatpush1.msra.mxu0 0.0
  %847 = vmatprep.subr.mxu0 0.0
  %848 = vmatpush1.msra.mxu0 0.0
  %849 = vmatprep.subr.mxu0 0.0
  %850 = vmatpush1.msra.mxu0 0.0
  %851 = vmatprep.subr.mxu0 0.0
  %852 = vmatpush1.msra.mxu0 0.0
  %853 = vmatprep.subr.mxu0 0.0
  %854 = vmatpush1.msra.mxu0 0.0
  %855 = vmatprep.subr.mxu0 0.0
  %856 = vmatpush1.msra.mxu0 0.0
  %857 = vmatprep.subr.mxu0 0.0
  %858 = vmatpush1.msra.mxu0 0.0
  %859 = vmatprep.subr.mxu0 0.0
  %860 = vmatpush1.msra.mxu0 0.0
  %861 = vmatprep.mubr.f32.mxu0 0.0
  %862 = vmatmul.mubr.f32.gmra.mrb[0].mxu0 %v795
  %v863 = vpop.f32.mrb[0].mxu0
  %v864 = vadd.f32 %v792, %v863
  %v865 = vpop.f32.mrb[0].mxu0
  %866 = vdwg.mxu0
  %vm867 = vcmask 64512
  %868 = vst.msk [vmem:[%s5] sm:$0xff] %vm867, %v864
  // Predicated region
  $region22: #{lstm_model_forward.1} parent=0 // pred_check
    _
  $region23: #{lstm_model_forward.1} parent=0 // pred_check_branch
    %870 = sbr.rel (0) target = $region25
  $region24: #{lstm_model_forward.1} parent=0 // pred_region
    _
  $region25: #{lstm_model_forward.1} parent=0 // pred_fallthru
    _
  // Predicated region
  $region26: #{lstm_model_forward.1} parent=0 // pred_check
    _
  $region27: #{lstm_model_forward.1} parent=0 // pred_check_branch
    %872 = sbr.rel (0) target = $region29
  $region28: #{lstm_model_forward.1} parent=0 // pred_region
    _
  $region29: #{lstm_model_forward.1} parent=0 // pred_fallthru
    _

</llo_original>
